<compile_context>
chip_gen: v7x
topology: tpu7x:2x2x1
jax: 0.10.0
libtpu: 0.0.40
codegen_flags: <defaults>
</compile_context>

<pallas_src>
import jax
import jax.numpy as jnp
from jax.experimental import pallas as pl
from jax.experimental.pallas import tpu as pltpu


def _criterion_partials_kernel(x_ref, t_ref, inter_ref, psum_ref, tsum_ref, ce_ref):
    x = x_ref[...].astype(jnp.float32)          # (N, C, tR, 128)
    t = t_ref[...].astype(jnp.int32)            # (N, tR, 128)
    n_cls = x.shape[1]

    valid = t >= 0                              # padded positions carry target = -1

    # --- softmax pieces over the class axis, as VPU ops across C leading slabs ---
    m = x[:, 0]
    for c in range(1, n_cls):
        m = jnp.maximum(m, x[:, c])             # (N, tR, 128)

    e = [jnp.exp(x[:, c] - m) for c in range(n_cls)]
    denom = e[0]
    for c in range(1, n_cls):
        denom = denom + e[c]                    # (N, tR, 128)

    # Approx reciprocal runs on the EUP slot; one Newton step restores ~f32 accuracy
    # (error ~eps^2) so the 1e-5 test tolerance still holds.
    inv = pl.reciprocal(denom, approx=True)
    inv = inv * (2.0 - denom * inv)
    # Fold the padding mask into inv once: p_c = e[c] * inv is then already zero at
    # padded positions, so no per-class valid multiply is needed for psum.
    inv = jnp.where(valid, inv, 0.0)
    lse = m + jnp.log(denom)                    # logsumexp, max-shifted

    # --- single per-class loop: mask_c reused for CE select, intersection, tsum ---
    logit_t = jnp.zeros_like(m)
    for c in range(n_cls):
        mask_c = t == c                                   # never true at padding (-1)
        mask_f = mask_c.astype(jnp.float32)
        p_c = e[c] * inv                                  # softmax prob, pad-masked
        logit_t = jnp.where(mask_c, x[:, c], logit_t)
        inter_ref[0, c] = jnp.sum(mask_f * p_c, axis=1)   # (N, 128) lane partials
        psum_ref[0, c] = jnp.sum(p_c, axis=1)
        tsum_ref[0, c] = jnp.sum(mask_f, axis=1)

    ce_elem = jnp.where(valid, lse - logit_t, 0.0)        # (N, tR, 128)
    ce_ref[0] = jnp.sum(ce_elem, axis=1)                  # (N, 128) lane partials


def _device_vmem_bytes():
    try:
        return int(pltpu.get_tpu_info().vmem_capacity_bytes)
    except Exception:
        return 64 * 1024 * 1024                 # conservative default (v7x-sized)


def _block_budget(N, C, elem_bytes, tgt_bytes, min_rows):
    """Rows-per-block budget and vmem limit, derived from device VMEM."""
    vmem_phys = _device_vmem_bytes()
    if vmem_phys > 96 * 1024 * 1024:            # v5e / v6e: 128 MiB physical VMEM
        logits_block_target = 16 * 1024 * 1024
        vmem_limit = 96 * 1024 * 1024
    else:                                       # v7x-class: 64 MiB physical VMEM
        logits_block_target = 8 * 1024 * 1024
        vmem_limit = 48 * 1024 * 1024

    # VMEM bytes per spatial row (128 lanes) resident during one grid step:
    #   2x double-buffered logits block (transport dtype)
    #   2x double-buffered target block
    #   ~(C + 7) live f32 slabs (e[], m, denom, inv, lse, logit_t, ce_elem, p_c),
    #   plus C more f32 slabs for the x cast when transport is sub-f32.
    row_logits = N * C * 128 * elem_bytes
    row_targets = N * 128 * tgt_bytes
    extra_cast = C if elem_bytes < 4 else 0
    row_temps = N * (C + 7 + extra_cast) * 128 * 4
    row_total = 2 * row_logits + 2 * row_targets + row_temps

    rows = min(vmem_limit // row_total, logits_block_target // row_logits)
    rows = max(min_rows, (rows // min_rows) * min_rows)
    return rows, vmem_limit


def _choose_tile_rows(R, budget_rows, min_rows):
    """Pick (tile_rows, padded_rows). Prefers G >= 4 blocks and divisor tiles."""
    # Force >= 4 blocks when the volume allows it: shards the "parallel" grid axis
    # across both v7x TensorCores and enables DMA/compute pipelining.
    if R >= 4 * min_rows:
        cap = max(min_rows, (R // 4) // min_rows * min_rows)
        budget_rows = min(budget_rows, cap)
    if R <= budget_rows:
        return R, R                             # tiny volume: one full-extent block
    # Prefer an exact divisor of R (avoids an HBM pad-copy of the whole volume),
    # as long as the block stays reasonably large.
    floor = max(min_rows, (budget_rows // 4) // min_rows * min_rows)
    d = budget_rows
    while d >= floor:
        if R % d == 0:
            return d, R
        d -= min_rows
    # Fall back: pad the spatial dim up to a multiple of the budget.
    tR = budget_rows
    R_pad = -(-R // tR) * tR
    return tR, R_pad


def criterion(logits, targets, *, transport_bf16=None):
    """logits: (N, C, H, W, D) float; targets: (N, H, W, D) int -> scalar loss."""
    N, C = int(logits.shape[0]), int(logits.shape[1])
    spatial = logits.shape[2:]
    S = 1
    for d in spatial:
        S *= int(d)
    R = -(-S // 128)

    if transport_bf16 is None:
        # Memory-bound kernel: halve logit HBM bytes on v5e/v6e (math stays f32
        # in-kernel). Keep exact f32 transport on v7x where bandwidth is ample.
        transport_bf16 = _device_vmem_bytes() > 96 * 1024 * 1024

    x = logits.reshape(N, C, S)
    if transport_bf16:
        x = x.astype(jnp.bfloat16)
    elem_bytes = jnp.dtype(x.dtype).itemsize

    # Targets as int8 when the class count allows (4x less HBM traffic).
    tgt_dtype = jnp.int8 if C <= 127 else jnp.int32
    tgt_bytes = jnp.dtype(tgt_dtype).itemsize
    min_rows = 32 if tgt_dtype == jnp.int8 else 8   # int8 sublane tile is 32

    budget_rows, vmem_limit = _block_budget(N, C, elem_bytes, tgt_bytes, min_rows)
    tR, R_pad = _choose_tile_rows(R, budget_rows, min_rows)
    S_pad = R_pad * 128
    G = R_pad // tR

    t = targets.reshape(N, S).astype(tgt_dtype)
    if S_pad != S:
        x = jnp.pad(x, ((0, 0), (0, 0), (0, S_pad - S)))
        t = jnp.pad(t, ((0, 0), (0, S_pad - S)), constant_values=-1)
    x = x.reshape(N, C, R_pad, 128)
    t = t.reshape(N, R_pad, 128)

    out_shape = (
        jax.ShapeDtypeStruct((G, C, N, 128), jnp.float32),   # intersection partials
        jax.ShapeDtypeStruct((G, C, N, 128), jnp.float32),   # prob-sum partials
        jax.ShapeDtypeStruct((G, C, N, 128), jnp.float32),   # target-sum partials
        jax.ShapeDtypeStruct((G, N, 128), jnp.float32),      # cross-entropy partials
    )

    inter_p, psum_p, tsum_p, ce_p = pl.pallas_call(
        _criterion_partials_kernel,
        out_shape=out_shape,
        grid=(G,),
        in_specs=[
            pl.BlockSpec((N, C, tR, 128), lambda g: (0, 0, g, 0)),
            pl.BlockSpec((N, tR, 128), lambda g: (0, g, 0)),
        ],
        out_specs=[
            pl.BlockSpec((1, C, N, 128), lambda g: (g, 0, 0, 0)),
            pl.BlockSpec((1, C, N, 128), lambda g: (g, 0, 0, 0)),
            pl.BlockSpec((1, C, N, 128), lambda g: (g, 0, 0, 0)),
            pl.BlockSpec((1, N, 128), lambda g: (g, 0, 0)),
        ],
        compiler_params=pltpu.CompilerParams(
            dimension_semantics=("parallel",),   # blocks independent -> 2-TC split
            vmem_limit_bytes=vmem_limit,
        ),
    )(x, t)

    # Tiny JAX epilogue: fold block + lane partials into the scalar loss.
    inter = jnp.sum(inter_p, axis=(0, 3))                    # (C, N)
    psum = jnp.sum(psum_p, axis=(0, 3))
    tsum = jnp.sum(tsum_p, axis=(0, 3))
    dice_eff = (2.0 * inter + 1.0) / (psum + tsum + 1.0)
    dice_loss = 1.0 - jnp.mean(dice_eff)                     # == mean_c [1 - mean_n dice]
    ce_loss = jnp.sum(ce_p) / float(N * S)                   # nn.CrossEntropyLoss mean
    return 0.2 * ce_loss + 0.8 * dice_loss


def _reference(logits, targets):
    # Pure-JAX reference replicating the PyTorch module semantics.
    N, C = logits.shape[0], logits.shape[1]
    x = logits.reshape(N, C, -1).astype(jnp.float32)         # (N, C, S)
    t = targets.reshape(N, -1).astype(jnp.int32)             # (N, S)
    logp = jax.nn.log_softmax(x, axis=1)
    ce = -jnp.mean(jnp.take_along_axis(logp, t[:, None, :], axis=1))
    p = jax.nn.softmax(x, axis=1)
    onehot = jax.nn.one_hot(t, C, axis=1, dtype=jnp.float32)
    inter = jnp.sum(p * onehot, axis=2)
    psum = jnp.sum(p, axis=2)
    tsum = jnp.sum(onehot, axis=2)
    dice = 1.0 - jnp.mean((2.0 * inter + 1.0) / (psum + tsum + 1.0))
    return 0.2 * ce + 0.8 * dice


if __name__ == "__main__":
    key = jax.random.PRNGKey(0)
    crit = jax.jit(criterion, static_argnames=("transport_bf16",))

    # Case 1: lane-aligned spatial volume, exact f32 transport.
    k1, k2, k3, k4, k5, k6 = jax.random.split(key, 6)
    N, C, H, W, D = 2, 4, 8, 8, 8
    logits = jax.random.normal(k1, (N, C, H, W, D), dtype=jnp.float32)
    targets = jax.random.randint(k2, (N, H, W, D), 0, C, dtype=jnp.int32)
    loss = jax.block_until_ready(crit(logits, targets, transport_bf16=False))
    ref = jax.block_until_ready(_reference(logits, targets))
    assert jnp.allclose(loss, ref, atol=1e-5, rtol=1e-5), (loss, ref)

    # Case 1b: same inputs with bf16 transport (halved HBM bytes, ~1e-3 rounding).
    loss_bf16 = jax.block_until_ready(crit(logits, targets, transport_bf16=True))
    assert jnp.allclose(loss_bf16, ref, atol=5e-3, rtol=5e-3), (loss_bf16, ref)

    # Case 1c: generation-default transport path (loose tolerance covers bf16).
    loss_def = jax.block_until_ready(crit(logits, targets))
    assert jnp.allclose(loss_def, ref, atol=5e-3, rtol=5e-3), (loss_def, ref)

    # Case 2: ragged spatial volume (exercises the pad/mask path).
    N2, C2, H2, W2, D2 = 2, 3, 5, 6, 7
    logits2 = jax.random.normal(k3, (N2, C2, H2, W2, D2), dtype=jnp.float32)
    targets2 = jax.random.randint(k4, (N2, H2, W2, D2), 0, C2, dtype=jnp.int32)
    loss2 = jax.block_until_ready(crit(logits2, targets2, transport_bf16=False))
    ref2 = jax.block_until_ready(_reference(logits2, targets2))
    assert jnp.allclose(loss2, ref2, atol=1e-5, rtol=1e-5), (loss2, ref2)

    # Case 3: volume large enough to split into G >= 4 blocks (multi-block path).
    N3, C3, H3, W3, D3 = 1, 3, 32, 32, 16
    logits3 = jax.random.normal(k5, (N3, C3, H3, W3, D3), dtype=jnp.float32)
    targets3 = jax.random.randint(k6, (N3, H3, W3, D3), 0, C3, dtype=jnp.int32)
    loss3 = jax.block_until_ready(crit(logits3, targets3, transport_bf16=False))
    ref3 = jax.block_until_ready(_reference(logits3, targets3))
    assert jnp.allclose(loss3, ref3, atol=1e-5, rtol=1e-5), (loss3, ref3)

    print("KERNEL_OK")
</pallas_src>

<mosaic_0001>
module attributes {stable_mosaic.version = 11 : i64} {
  func.func @_criterion_partials_kernel(%arg0: i32, %arg1: memref<2x4x4x128xf32, #tpu.memory_space<vmem>>, %arg2: memref<2x4x128xi8, #tpu.memory_space<vmem>>, %arg3: memref<1x4x2x128xf32, #tpu.memory_space<vmem>>, %arg4: memref<1x4x2x128xf32, #tpu.memory_space<vmem>>, %arg5: memref<1x4x2x128xf32, #tpu.memory_space<vmem>>, %arg6: memref<1x2x128xf32, #tpu.memory_space<vmem>>) attributes {dimension_semantics = [#tpu.dimension_semantics<parallel>], iteration_bounds = array<i64: 1>, scalar_prefetch = 0 : i64, scratch_operands = 0 : i64, tpu.core_type = #tpu.core_type<tc>, window_params = [{transform_indices = @transform_0, window_bounds = array<i64: 2, 4, 4, 128>}, {transform_indices = @transform_1, window_bounds = array<i64: 2, 4, 128>}, {transform_indices = @transform_2, window_bounds = array<i64: 1, 4, 2, 128>}, {transform_indices = @transform_3, window_bounds = array<i64: 1, 4, 2, 128>}, {transform_indices = @transform_4, window_bounds = array<i64: 1, 4, 2, 128>}, {transform_indices = @transform_5, window_bounds = array<i64: 1, 2, 128>}]} {
    %c0 = arith.constant 0 : index
    %c0_0 = arith.constant 0 : index
    %c0_1 = arith.constant 0 : index
    %c0_2 = arith.constant 0 : index
    %0 = vector.load %arg1[%c0, %c0_0, %c0_1, %c0_2] : memref<2x4x4x128xf32, #tpu.memory_space<vmem>>, vector<2x4x4x128xf32>
    %c0_3 = arith.constant 0 : index
    %c0_4 = arith.constant 0 : index
    %c0_5 = arith.constant 0 : index
    %1 = vector.load %arg2[%c0_3, %c0_4, %c0_5] : memref<2x4x128xi8, #tpu.memory_space<vmem>>, vector<2x4x128xi8>
    %2 = arith.extsi %1 : vector<2x4x128xi8> to vector<2x4x128xi32>
    %c0_i32 = arith.constant 0 : i32
    %3 = vector.broadcast %c0_i32 : i32 to vector<2x4x128xi32>
    %4 = arith.cmpi sge, %2, %3 : vector<2x4x128xi32>
    %5 = vector.extract_strided_slice %0 {offsets = [0, 0, 0, 0], sizes = [2, 1, 4, 128], strides = [1, 1, 1, 1]} : vector<2x4x4x128xf32> to vector<2x1x4x128xf32>
    %6 = vector.shape_cast %5 : vector<2x1x4x128xf32> to vector<2x4x128xf32>
    %7 = vector.extract_strided_slice %0 {offsets = [0, 1, 0, 0], sizes = [2, 1, 4, 128], strides = [1, 1, 1, 1]} : vector<2x4x4x128xf32> to vector<2x1x4x128xf32>
    %8 = vector.shape_cast %7 : vector<2x1x4x128xf32> to vector<2x4x128xf32>
    %9 = arith.maximumf %6, %8 : vector<2x4x128xf32>
    %10 = vector.extract_strided_slice %0 {offsets = [0, 2, 0, 0], sizes = [2, 1, 4, 128], strides = [1, 1, 1, 1]} : vector<2x4x4x128xf32> to vector<2x1x4x128xf32>
    %11 = vector.shape_cast %10 : vector<2x1x4x128xf32> to vector<2x4x128xf32>
    %12 = arith.maximumf %9, %11 : vector<2x4x128xf32>
    %13 = vector.extract_strided_slice %0 {offsets = [0, 3, 0, 0], sizes = [2, 1, 4, 128], strides = [1, 1, 1, 1]} : vector<2x4x4x128xf32> to vector<2x1x4x128xf32>
    %14 = vector.shape_cast %13 : vector<2x1x4x128xf32> to vector<2x4x128xf32>
    %15 = arith.maximumf %12, %14 : vector<2x4x128xf32>
    %16 = vector.extract_strided_slice %0 {offsets = [0, 0, 0, 0], sizes = [2, 1, 4, 128], strides = [1, 1, 1, 1]} : vector<2x4x4x128xf32> to vector<2x1x4x128xf32>
    %17 = vector.shape_cast %16 : vector<2x1x4x128xf32> to vector<2x4x128xf32>
    %18 = arith.subf %17, %15 : vector<2x4x128xf32>
    %19 = math.exp %18 : vector<2x4x128xf32>
    %20 = vector.extract_strided_slice %0 {offsets = [0, 1, 0, 0], sizes = [2, 1, 4, 128], strides = [1, 1, 1, 1]} : vector<2x4x4x128xf32> to vector<2x1x4x128xf32>
    %21 = vector.shape_cast %20 : vector<2x1x4x128xf32> to vector<2x4x128xf32>
    %22 = arith.subf %21, %15 : vector<2x4x128xf32>
    %23 = math.exp %22 : vector<2x4x128xf32>
    %24 = vector.extract_strided_slice %0 {offsets = [0, 2, 0, 0], sizes = [2, 1, 4, 128], strides = [1, 1, 1, 1]} : vector<2x4x4x128xf32> to vector<2x1x4x128xf32>
    %25 = vector.shape_cast %24 : vector<2x1x4x128xf32> to vector<2x4x128xf32>
    %26 = arith.subf %25, %15 : vector<2x4x128xf32>
    %27 = math.exp %26 : vector<2x4x128xf32>
    %28 = vector.extract_strided_slice %0 {offsets = [0, 3, 0, 0], sizes = [2, 1, 4, 128], strides = [1, 1, 1, 1]} : vector<2x4x4x128xf32> to vector<2x1x4x128xf32>
    %29 = vector.shape_cast %28 : vector<2x1x4x128xf32> to vector<2x4x128xf32>
    %30 = arith.subf %29, %15 : vector<2x4x128xf32>
    %31 = math.exp %30 : vector<2x4x128xf32>
    %32 = arith.addf %19, %23 : vector<2x4x128xf32>
    %33 = arith.addf %32, %27 : vector<2x4x128xf32>
    %34 = arith.addf %33, %31 : vector<2x4x128xf32>
    %35 = tpu.reciprocal %34 {approx = true} : vector<2x4x128xf32> -> vector<2x4x128xf32>
    %36 = arith.mulf %34, %35 : vector<2x4x128xf32>
    %cst = arith.constant 2.000000e+00 : f32
    %37 = vector.broadcast %cst : f32 to vector<2x4x128xf32>
    %38 = arith.subf %37, %36 : vector<2x4x128xf32>
    %39 = arith.mulf %35, %38 : vector<2x4x128xf32>
    %cst_6 = arith.constant 0.000000e+00 : f32
    %40 = vector.broadcast %cst_6 : f32 to vector<2x4x128xf32>
    %41 = arith.select %4, %39, %40 : vector<2x4x128xi1>, vector<2x4x128xf32>
    %42 = math.log %34 : vector<2x4x128xf32>
    %43 = arith.addf %15, %42 : vector<2x4x128xf32>
    %cst_7 = arith.constant 0.000000e+00 : f32
    %44 = vector.broadcast %cst_7 : f32 to vector<2x4x128xf32>
    %c0_i32_8 = arith.constant 0 : i32
    %45 = vector.broadcast %c0_i32_8 : i32 to vector<2x4x128xi32>
    %46 = arith.cmpi eq, %2, %45 : vector<2x4x128xi32>
    %47 = arith.extui %46 : vector<2x4x128xi1> to vector<2x4x128xi32>
    %48 = arith.sitofp %47 : vector<2x4x128xi32> to vector<2x4x128xf32>
    %49 = arith.mulf %19, %41 : vector<2x4x128xf32>
    %50 = vector.extract_strided_slice %0 {offsets = [0, 0, 0, 0], sizes = [2, 1, 4, 128], strides = [1, 1, 1, 1]} : vector<2x4x4x128xf32> to vector<2x1x4x128xf32>
    %51 = vector.shape_cast %50 : vector<2x1x4x128xf32> to vector<2x4x128xf32>
    %52 = arith.select %46, %51, %44 : vector<2x4x128xi1>, vector<2x4x128xf32>
    %53 = arith.mulf %48, %49 : vector<2x4x128xf32>
    %cst_9 = arith.constant dense<0.000000e+00> : vector<2x128xf32>
    %54 = vector.multi_reduction <add>, %53, %cst_9 [1] : vector<2x4x128xf32> to vector<2x128xf32>
    %c0_10 = arith.constant 0 : index
    %c0_11 = arith.constant 0 : index
    %c0_12 = arith.constant 0 : index
    %c0_13 = arith.constant 0 : index
    %55 = vector.load %arg3[%c0_10, %c0_11, %c0_12, %c0_13] : memref<1x4x2x128xf32, #tpu.memory_space<vmem>>, vector<1x1x2x128xf32>
    %56 = vector.shape_cast %55 : vector<1x1x2x128xf32> to vector<2x128xf32>
    %57 = vector.shape_cast %54 : vector<2x128xf32> to vector<1x1x2x128xf32>
    tpu.vector_store %arg3[%c0_10, %c0_11, %c0_12, %c0_13], %57 {strides = array<i32>} : memref<1x4x2x128xf32, #tpu.memory_space<vmem>>, vector<1x1x2x128xf32>,
    %cst_14 = arith.constant dense<0.000000e+00> : vector<2x128xf32>
    %58 = vector.multi_reduction <add>, %49, %cst_14 [1] : vector<2x4x128xf32> to vector<2x128xf32>
    %c0_15 = arith.constant 0 : index
    %c0_16 = arith.constant 0 : index
    %c0_17 = arith.constant 0 : index
    %c0_18 = arith.constant 0 : index
    %59 = vector.load %arg4[%c0_15, %c0_16, %c0_17, %c0_18] : memref<1x4x2x128xf32, #tpu.memory_space<vmem>>, vector<1x1x2x128xf32>
    %60 = vector.shape_cast %59 : vector<1x1x2x128xf32> to vector<2x128xf32>
    %61 = vector.shape_cast %58 : vector<2x128xf32> to vector<1x1x2x128xf32>
    tpu.vector_store %arg4[%c0_15, %c0_16, %c0_17, %c0_18], %61 {strides = array<i32>} : memref<1x4x2x128xf32, #tpu.memory_space<vmem>>, vector<1x1x2x128xf32>,
    %cst_19 = arith.constant dense<0.000000e+00> : vector<2x128xf32>
    %62 = vector.multi_reduction <add>, %48, %cst_19 [1] : vector<2x4x128xf32> to vector<2x128xf32>
    %c0_20 = arith.constant 0 : index
    %c0_21 = arith.constant 0 : index
    %c0_22 = arith.constant 0 : index
    %c0_23 = arith.constant 0 : index
    %63 = vector.load %arg5[%c0_20, %c0_21, %c0_22, %c0_23] : memref<1x4x2x128xf32, #tpu.memory_space<vmem>>, vector<1x1x2x128xf32>
    %64 = vector.shape_cast %63 : vector<1x1x2x128xf32> to vector<2x128xf32>
    %65 = vector.shape_cast %62 : vector<2x128xf32> to vector<1x1x2x128xf32>
    tpu.vector_store %arg5[%c0_20, %c0_21, %c0_22, %c0_23], %65 {strides = array<i32>} : memref<1x4x2x128xf32, #tpu.memory_space<vmem>>, vector<1x1x2x128xf32>,
    %c1_i32 = arith.constant 1 : i32
    %66 = vector.broadcast %c1_i32 : i32 to vector<2x4x128xi32>
    %67 = arith.cmpi eq, %2, %66 : vector<2x4x128xi32>
    %68 = arith.extui %67 : vector<2x4x128xi1> to vector<2x4x128xi32>
    %69 = arith.sitofp %68 : vector<2x4x128xi32> to vector<2x4x128xf32>
    %70 = arith.mulf %23, %41 : vector<2x4x128xf32>
    %71 = vector.extract_strided_slice %0 {offsets = [0, 1, 0, 0], sizes = [2, 1, 4, 128], strides = [1, 1, 1, 1]} : vector<2x4x4x128xf32> to vector<2x1x4x128xf32>
    %72 = vector.shape_cast %71 : vector<2x1x4x128xf32> to vector<2x4x128xf32>
    %73 = arith.select %67, %72, %52 : vector<2x4x128xi1>, vector<2x4x128xf32>
    %74 = arith.mulf %69, %70 : vector<2x4x128xf32>
    %cst_24 = arith.constant dense<0.000000e+00> : vector<2x128xf32>
    %75 = vector.multi_reduction <add>, %74, %cst_24 [1] : vector<2x4x128xf32> to vector<2x128xf32>
    %c0_25 = arith.constant 0 : index
    %c1 = arith.constant 1 : index
    %c0_26 = arith.constant 0 : index
    %c0_27 = arith.constant 0 : index
    %76 = vector.load %arg3[%c0_25, %c1, %c0_26, %c0_27] : memref<1x4x2x128xf32, #tpu.memory_space<vmem>>, vector<1x1x2x128xf32>
    %77 = vector.shape_cast %76 : vector<1x1x2x128xf32> to vector<2x128xf32>
    %78 = vector.shape_cast %75 : vector<2x128xf32> to vector<1x1x2x128xf32>
    tpu.vector_store %arg3[%c0_25, %c1, %c0_26, %c0_27], %78 {strides = array<i32>} : memref<1x4x2x128xf32, #tpu.memory_space<vmem>>, vector<1x1x2x128xf32>,
    %cst_28 = arith.constant dense<0.000000e+00> : vector<2x128xf32>
    %79 = vector.multi_reduction <add>, %70, %cst_28 [1] : vector<2x4x128xf32> to vector<2x128xf32>
    %c0_29 = arith.constant 0 : index
    %c1_30 = arith.constant 1 : index
    %c0_31 = arith.constant 0 : index
    %c0_32 = arith.constant 0 : index
    %80 = vector.load %arg4[%c0_29, %c1_30, %c0_31, %c0_32] : memref<1x4x2x128xf32, #tpu.memory_space<vmem>>, vector<1x1x2x128xf32>
    %81 = vector.shape_cast %80 : vector<1x1x2x128xf32> to vector<2x128xf32>
    %82 = vector.shape_cast %79 : vector<2x128xf32> to vector<1x1x2x128xf32>
    tpu.vector_store %arg4[%c0_29, %c1_30, %c0_31, %c0_32], %82 {strides = array<i32>} : memref<1x4x2x128xf32, #tpu.memory_space<vmem>>, vector<1x1x2x128xf32>,
    %cst_33 = arith.constant dense<0.000000e+00> : vector<2x128xf32>
    %83 = vector.multi_reduction <add>, %69, %cst_33 [1] : vector<2x4x128xf32> to vector<2x128xf32>
    %c0_34 = arith.constant 0 : index
    %c1_35 = arith.constant 1 : index
    %c0_36 = arith.constant 0 : index
    %c0_37 = arith.constant 0 : index
    %84 = vector.load %arg5[%c0_34, %c1_35, %c0_36, %c0_37] : memref<1x4x2x128xf32, #tpu.memory_space<vmem>>, vector<1x1x2x128xf32>
    %85 = vector.shape_cast %84 : vector<1x1x2x128xf32> to vector<2x128xf32>
    %86 = vector.shape_cast %83 : vector<2x128xf32> to vector<1x1x2x128xf32>
    tpu.vector_store %arg5[%c0_34, %c1_35, %c0_36, %c0_37], %86 {strides = array<i32>} : memref<1x4x2x128xf32, #tpu.memory_space<vmem>>, vector<1x1x2x128xf32>,
    %c2_i32 = arith.constant 2 : i32
    %87 = vector.broadcast %c2_i32 : i32 to vector<2x4x128xi32>
    %88 = arith.cmpi eq, %2, %87 : vector<2x4x128xi32>
    %89 = arith.extui %88 : vector<2x4x128xi1> to vector<2x4x128xi32>
    %90 = arith.sitofp %89 : vector<2x4x128xi32> to vector<2x4x128xf32>
    %91 = arith.mulf %27, %41 : vector<2x4x128xf32>
    %92 = vector.extract_strided_slice %0 {offsets = [0, 2, 0, 0], sizes = [2, 1, 4, 128], strides = [1, 1, 1, 1]} : vector<2x4x4x128xf32> to vector<2x1x4x128xf32>
    %93 = vector.shape_cast %92 : vector<2x1x4x128xf32> to vector<2x4x128xf32>
    %94 = arith.select %88, %93, %73 : vector<2x4x128xi1>, vector<2x4x128xf32>
    %95 = arith.mulf %90, %91 : vector<2x4x128xf32>
    %cst_38 = arith.constant dense<0.000000e+00> : vector<2x128xf32>
    %96 = vector.multi_reduction <add>, %95, %cst_38 [1] : vector<2x4x128xf32> to vector<2x128xf32>
    %c0_39 = arith.constant 0 : index
    %c2 = arith.constant 2 : index
    %c0_40 = arith.constant 0 : index
    %c0_41 = arith.constant 0 : index
    %97 = vector.load %arg3[%c0_39, %c2, %c0_40, %c0_41] : memref<1x4x2x128xf32, #tpu.memory_space<vmem>>, vector<1x1x2x128xf32>
    %98 = vector.shape_cast %97 : vector<1x1x2x128xf32> to vector<2x128xf32>
    %99 = vector.shape_cast %96 : vector<2x128xf32> to vector<1x1x2x128xf32>
    tpu.vector_store %arg3[%c0_39, %c2, %c0_40, %c0_41], %99 {strides = array<i32>} : memref<1x4x2x128xf32, #tpu.memory_space<vmem>>, vector<1x1x2x128xf32>,
    %cst_42 = arith.constant dense<0.000000e+00> : vector<2x128xf32>
    %100 = vector.multi_reduction <add>, %91, %cst_42 [1] : vector<2x4x128xf32> to vector<2x128xf32>
    %c0_43 = arith.constant 0 : index
    %c2_44 = arith.constant 2 : index
    %c0_45 = arith.constant 0 : index
    %c0_46 = arith.constant 0 : index
    %101 = vector.load %arg4[%c0_43, %c2_44, %c0_45, %c0_46] : memref<1x4x2x128xf32, #tpu.memory_space<vmem>>, vector<1x1x2x128xf32>
    %102 = vector.shape_cast %101 : vector<1x1x2x128xf32> to vector<2x128xf32>
    %103 = vector.shape_cast %100 : vector<2x128xf32> to vector<1x1x2x128xf32>
    tpu.vector_store %arg4[%c0_43, %c2_44, %c0_45, %c0_46], %103 {strides = array<i32>} : memref<1x4x2x128xf32, #tpu.memory_space<vmem>>, vector<1x1x2x128xf32>,
    %cst_47 = arith.constant dense<0.000000e+00> : vector<2x128xf32>
    %104 = vector.multi_reduction <add>, %90, %cst_47 [1] : vector<2x4x128xf32> to vector<2x128xf32>
    %c0_48 = arith.constant 0 : index
    %c2_49 = arith.constant 2 : index
    %c0_50 = arith.constant 0 : index
    %c0_51 = arith.constant 0 : index
    %105 = vector.load %arg5[%c0_48, %c2_49, %c0_50, %c0_51] : memref<1x4x2x128xf32, #tpu.memory_space<vmem>>, vector<1x1x2x128xf32>
    %106 = vector.shape_cast %105 : vector<1x1x2x128xf32> to vector<2x128xf32>
    %107 = vector.shape_cast %104 : vector<2x128xf32> to vector<1x1x2x128xf32>
    tpu.vector_store %arg5[%c0_48, %c2_49, %c0_50, %c0_51], %107 {strides = array<i32>} : memref<1x4x2x128xf32, #tpu.memory_space<vmem>>, vector<1x1x2x128xf32>,
    %c3_i32 = arith.constant 3 : i32
    %108 = vector.broadcast %c3_i32 : i32 to vector<2x4x128xi32>
    %109 = arith.cmpi eq, %2, %108 : vector<2x4x128xi32>
    %110 = arith.extui %109 : vector<2x4x128xi1> to vector<2x4x128xi32>
    %111 = arith.sitofp %110 : vector<2x4x128xi32> to vector<2x4x128xf32>
    %112 = arith.mulf %31, %41 : vector<2x4x128xf32>
    %113 = vector.extract_strided_slice %0 {offsets = [0, 3, 0, 0], sizes = [2, 1, 4, 128], strides = [1, 1, 1, 1]} : vector<2x4x4x128xf32> to vector<2x1x4x128xf32>
    %114 = vector.shape_cast %113 : vector<2x1x4x128xf32> to vector<2x4x128xf32>
    %115 = arith.select %109, %114, %94 : vector<2x4x128xi1>, vector<2x4x128xf32>
    %116 = arith.mulf %111, %112 : vector<2x4x128xf32>
    %cst_52 = arith.constant dense<0.000000e+00> : vector<2x128xf32>
    %117 = vector.multi_reduction <add>, %116, %cst_52 [1] : vector<2x4x128xf32> to vector<2x128xf32>
    %c0_53 = arith.constant 0 : index
    %c3 = arith.constant 3 : index
    %c0_54 = arith.constant 0 : index
    %c0_55 = arith.constant 0 : index
    %118 = vector.load %arg3[%c0_53, %c3, %c0_54, %c0_55] : memref<1x4x2x128xf32, #tpu.memory_space<vmem>>, vector<1x1x2x128xf32>
    %119 = vector.shape_cast %118 : vector<1x1x2x128xf32> to vector<2x128xf32>
    %120 = vector.shape_cast %117 : vector<2x128xf32> to vector<1x1x2x128xf32>
    tpu.vector_store %arg3[%c0_53, %c3, %c0_54, %c0_55], %120 {strides = array<i32>} : memref<1x4x2x128xf32, #tpu.memory_space<vmem>>, vector<1x1x2x128xf32>,
    %cst_56 = arith.constant dense<0.000000e+00> : vector<2x128xf32>
    %121 = vector.multi_reduction <add>, %112, %cst_56 [1] : vector<2x4x128xf32> to vector<2x128xf32>
    %c0_57 = arith.constant 0 : index
    %c3_58 = arith.constant 3 : index
    %c0_59 = arith.constant 0 : index
    %c0_60 = arith.constant 0 : index
    %122 = vector.load %arg4[%c0_57, %c3_58, %c0_59, %c0_60] : memref<1x4x2x128xf32, #tpu.memory_space<vmem>>, vector<1x1x2x128xf32>
    %123 = vector.shape_cast %122 : vector<1x1x2x128xf32> to vector<2x128xf32>
    %124 = vector.shape_cast %121 : vector<2x128xf32> to vector<1x1x2x128xf32>
    tpu.vector_store %arg4[%c0_57, %c3_58, %c0_59, %c0_60], %124 {strides = array<i32>} : memref<1x4x2x128xf32, #tpu.memory_space<vmem>>, vector<1x1x2x128xf32>,
    %cst_61 = arith.constant dense<0.000000e+00> : vector<2x128xf32>
    %125 = vector.multi_reduction <add>, %111, %cst_61 [1] : vector<2x4x128xf32> to vector<2x128xf32>
    %c0_62 = arith.constant 0 : index
    %c3_63 = arith.constant 3 : index
    %c0_64 = arith.constant 0 : index
    %c0_65 = arith.constant 0 : index
    %126 = vector.load %arg5[%c0_62, %c3_63, %c0_64, %c0_65] : memref<1x4x2x128xf32, #tpu.memory_space<vmem>>, vector<1x1x2x128xf32>
    %127 = vector.shape_cast %126 : vector<1x1x2x128xf32> to vector<2x128xf32>
    %128 = vector.shape_cast %125 : vector<2x128xf32> to vector<1x1x2x128xf32>
    tpu.vector_store %arg5[%c0_62, %c3_63, %c0_64, %c0_65], %128 {strides = array<i32>} : memref<1x4x2x128xf32, #tpu.memory_space<vmem>>, vector<1x1x2x128xf32>,
    %129 = arith.subf %43, %115 : vector<2x4x128xf32>
    %cst_66 = arith.constant 0.000000e+00 : f32
    %130 = vector.broadcast %cst_66 : f32 to vector<2x4x128xf32>
    %131 = arith.select %4, %129, %130 : vector<2x4x128xi1>, vector<2x4x128xf32>
    %cst_67 = arith.constant dense<0.000000e+00> : vector<2x128xf32>
    %132 = vector.multi_reduction <add>, %131, %cst_67 [1] : vector<2x4x128xf32> to vector<2x128xf32>
    %c0_68 = arith.constant 0 : index
    %c0_69 = arith.constant 0 : index
    %c0_70 = arith.constant 0 : index
    %133 = vector.load %arg6[%c0_68, %c0_69, %c0_70] : memref<1x2x128xf32, #tpu.memory_space<vmem>>, vector<1x2x128xf32>
    %134 = vector.shape_cast %133 : vector<1x2x128xf32> to vector<2x128xf32>
    %135 = vector.shape_cast %132 : vector<2x128xf32> to vector<1x2x128xf32>
    tpu.vector_store %arg6[%c0_68, %c0_69, %c0_70], %135 {strides = array<i32>} : memref<1x2x128xf32, #tpu.memory_space<vmem>>, vector<1x2x128xf32>,
    return
  }
  func.func @transform_0(%arg0: i32) -> (i32, i32, i32, i32) {
    %c0_i32 = arith.constant 0 : i32
    %c0_i32_0 = arith.constant 0 : i32
    %c0_i32_1 = arith.constant 0 : i32
    %c0_i32_2 = arith.constant 0 : i32
    return %c0_i32, %c0_i32_0, %arg0, %c0_i32_1 : i32, i32, i32, i32
  }
  func.func @transform_1(%arg0: i32) -> (i32, i32, i32) {
    %c0_i32 = arith.constant 0 : i32
    %c0_i32_0 = arith.constant 0 : i32
    %c0_i32_1 = arith.constant 0 : i32
    return %c0_i32, %arg0, %c0_i32_0 : i32, i32, i32
  }
  func.func @transform_2(%arg0: i32) -> (i32, i32, i32, i32) {
    %c0_i32 = arith.constant 0 : i32
    %c0_i32_0 = arith.constant 0 : i32
    %c0_i32_1 = arith.constant 0 : i32
    %c0_i32_2 = arith.constant 0 : i32
    return %arg0, %c0_i32, %c0_i32_0, %c0_i32_1 : i32, i32, i32, i32
  }
  func.func @transform_3(%arg0: i32) -> (i32, i32, i32, i32) {
    %c0_i32 = arith.constant 0 : i32
    %c0_i32_0 = arith.constant 0 : i32
    %c0_i32_1 = arith.constant 0 : i32
    %c0_i32_2 = arith.constant 0 : i32
    return %arg0, %c0_i32, %c0_i32_0, %c0_i32_1 : i32, i32, i32, i32
  }
  func.func @transform_4(%arg0: i32) -> (i32, i32, i32, i32) {
    %c0_i32 = arith.constant 0 : i32
    %c0_i32_0 = arith.constant 0 : i32
    %c0_i32_1 = arith.constant 0 : i32
    %c0_i32_2 = arith.constant 0 : i32
    return %arg0, %c0_i32, %c0_i32_0, %c0_i32_1 : i32, i32, i32, i32
  }
  func.func @transform_5(%arg0: i32) -> (i32, i32, i32) {
    %c0_i32 = arith.constant 0 : i32
    %c0_i32_0 = arith.constant 0 : i32
    %c0_i32_1 = arith.constant 0 : i32
    return %arg0, %c0_i32, %c0_i32_0 : i32, i32, i32
  }
}

</mosaic_0001>

<llo_original>
// kernel: criterion.1
$region0: #{criterion.1}
  #allocation0 [shape = 'u32[]', space=smem, size = 0x4, offset = 0x4, fixed_abs, tag = 'smem constant byte address 0x4 - core index']
  #allocation1 [shape = 'u32[144,128]{1,0:T(1,128)}', space=vmem, size = 0x12000, scoped, tag = 'internal scratch']
  %s0 = inlined_call_operand.vmem [shape: f32[2,4,4,128], index: 0, kind: input, shape index: {}]
  %s1 = inlined_call_operand.vmem [shape: s8[2,4,128], index: 1, kind: input, shape index: {}]
  %s2 = inlined_call_operand.vmem [shape: f32[1,4,2,128], index: 2, kind: output, shape index: {0}]
  %s3 = inlined_call_operand.vmem [shape: f32[1,4,2,128], index: 3, kind: output, shape index: {1}]
  %s4 = inlined_call_operand.vmem [shape: f32[1,4,2,128], index: 4, kind: output, shape index: {2}]
  %s5 = inlined_call_operand.vmem [shape: f32[1,2,128], index: 5, kind: output, shape index: {3}]
  %6 = xla_tuple %s2, %s3, %s4, %s5
  %s7 = sld [smem:[#allocation0]]
  $region42: #{criterion.1} parent=0
    _
  %s9 = ssub.s32 1, %s7
  %s10 = scalar_select 0, %s9, %s7
  // Predicated region
  $region2: #{criterion.1} parent=0 // pred_check
    _
  $region3: #{criterion.1} parent=0 // pred_check_branch
    %12 = sbr.rel (0) target = $region5
  $region4: #{criterion.1} parent=0 // pred_region
    _
  $region5: #{criterion.1} parent=0 // pred_fallthru
    _
  // Predicated region
  $region6: #{criterion.1} parent=0 // pred_check
    _
  $region7: #{criterion.1} parent=0 // pred_check_branch
    %14 = sbr.rel (0) target = $region9
  $region8: #{criterion.1} parent=0 // pred_region
    _
  $region9: #{criterion.1} parent=0 // pred_fallthru
    _
  %v15 = vld [vmem:[%s0] sm:$0xf]
  %v16 = vld [vmem:[%s0 + $0x4] sm:$0xf]
  %v17 = vld [vmem:[%s0 + $0x8] sm:$0xf]
  %v18 = vld [vmem:[%s0 + $0xc] sm:$0xf]
  %v19 = vld [vmem:[%s0 + $0x10] sm:$0xf]
  %v20 = vld [vmem:[%s0 + $0x14] sm:$0xf]
  %v21 = vld [vmem:[%s0 + $0x18] sm:$0xf]
  %v22 = vld [vmem:[%s0 + $0x1c] sm:$0xf]
  %v23 = vld [vmem:[%s1] sm:$0x1]
  %v24 = vld [vmem:[%s1 + $0x1] sm:$0x1]
  %v25 = vunpack.c.0.s8 %v23
  %v26 = vunpack.c.0.s8 %v24
  %vm27 = vcmp.ge.s32.totalorder %v25, 0
  %vm28 = vcmp.ge.s32.totalorder %v26, 0
  %v29 = vmax.f32 %v15, %v16
  %v30 = vmax.f32 %v19, %v20
  %v31 = vmax.f32 %v29, %v17
  %v32 = vmax.f32 %v30, %v21
  %v33 = vmax.f32 %v31, %v18
  %v34 = vmax.f32 %v32, %v22
  %v35 = vsub.f32 %v15, %v33
  %v36 = vsub.f32 %v19, %v34
  %v37 = vmul.f32 %v35, 1.442695
  %v38 = vpow.pop %v37
  %v39 = vmul.f32 %v36, 1.442695
  %v40 = vpow.pop %v39
  %v41 = vsub.f32 %v16, %v33
  %v42 = vsub.f32 %v20, %v34
  %v43 = vmul.f32 %v41, 1.442695
  %v44 = vpow.pop %v43
  %v45 = vmul.f32 %v42, 1.442695
  %v46 = vpow.pop %v45
  %v47 = vsub.f32 %v17, %v33
  %v48 = vsub.f32 %v21, %v34
  %v49 = vmul.f32 %v47, 1.442695
  %v50 = vpow.pop %v49
  %v51 = vmul.f32 %v48, 1.442695
  %v52 = vpow.pop %v51
  %v53 = vsub.f32 %v18, %v33
  %v54 = vsub.f32 %v22, %v34
  %v55 = vmul.f32 %v53, 1.442695
  %v56 = vpow.pop %v55
  %v57 = vmul.f32 %v54, 1.442695
  %v58 = vpow.pop %v57
  %v59 = vadd.f32 %v38, %v44
  %v60 = vadd.f32 %v40, %v46
  %v61 = vadd.f32 %v59, %v50
  %v62 = vadd.f32 %v60, %v52
  %v63 = vadd.f32 %v61, %v56
  %v64 = vadd.f32 %v62, %v58
  %v65 = vrcp.pop %v63
  %v66 = vrcp.pop %v64
  %v67 = vmul.f32 %v63, %v65
  %v68 = vmul.f32 %v64, %v66
  %v69 = vsub.f32 2.0, %v67
  %v70 = vsub.f32 2.0, %v68
  %v71 = vmul.f32 %v65, %v69
  %v72 = vmul.f32 %v66, %v70
  %v73 = vsel %vm27, %v71, 0.0
  %v74 = vsel %vm28, %v72, 0.0
  %v75 = vlog2.pop %v63
  %v76 = vmul.f32 %v75, 0.6931472
  %v77 = vlog2.pop %v64
  %v78 = vmul.f32 %v77, 0.6931472
  %v79 = vadd.f32 %v33, %v76
  %v80 = vadd.f32 %v34, %v78
  %vm81 = vcmp.eq.s32.totalorder %v25, 0
  %vm82 = vcmp.eq.s32.totalorder %v26, 0
  %v83 = vsel %vm81, 1, 0
  %v84 = vsel %vm82, 1, 0
  %v85 = vcvt.s32.f32 %v83
  %v86 = vcvt.s32.f32 %v84
  %v87 = vmul.f32 %v38, %v73
  %v88 = vmul.f32 %v40, %v74
  %v89 = vsel %vm81, %v15, 0.0
  %v90 = vsel %vm82, %v19, 0.0
  %v91 = vmul.f32 %v85, %v87
  %v92 = vmul.f32 %v86, %v88
  %vm93 = vcmask 1043456
  %v94 = vsel %vm93, %v91, 0.0
  %v95 = vrot.slane %v94, 4
  %v96 = vadd.f32 %v94, %v95
  %v97 = vrot.slane %v96, 2
  %v98 = vadd.f32 %v96, %v97
  %v99 = vrot.slane %v98, 1
  %v100 = vadd.f32 %v98, %v99
  %v101 = vsel %vm93, %v92, 0.0
  %v102 = vrot.slane %v101, 4
  %v103 = vadd.f32 %v101, %v102
  %v104 = vrot.slane %v103, 2
  %v105 = vadd.f32 %v103, %v104
  %v106 = vrot.slane %v105, 1
  %v107 = vadd.f32 %v105, %v106
  %vm110 = vcmask 1041409
  %v111 = vsel %vm110, %v107, %v100
  %113 = vst [vmem:[%s2] sm:$0x3] %v111
  %v114 = vsel %vm93, %v87, 0.0
  %v115 = vrot.slane %v114, 4
  %v116 = vadd.f32 %v114, %v115
  %v117 = vrot.slane %v116, 2
  %v118 = vadd.f32 %v116, %v117
  %v119 = vrot.slane %v118, 1
  %v120 = vadd.f32 %v118, %v119
  %v121 = vsel %vm93, %v88, 0.0
  %v122 = vrot.slane %v121, 4
  %v123 = vadd.f32 %v121, %v122
  %v124 = vrot.slane %v123, 2
  %v125 = vadd.f32 %v123, %v124
  %v126 = vrot.slane %v125, 1
  %v127 = vadd.f32 %v125, %v126
  %v130 = vsel %vm110, %v127, %v120
  %132 = vst [vmem:[%s3] sm:$0x3] %v130
  %v133 = vsel %vm93, %v85, 0.0
  %v134 = vrot.slane %v133, 4
  %v135 = vadd.f32 %v133, %v134
  %v136 = vrot.slane %v135, 2
  %v137 = vadd.f32 %v135, %v136
  %v138 = vrot.slane %v137, 1
  %v139 = vadd.f32 %v137, %v138
  %v140 = vsel %vm93, %v86, 0.0
  %v141 = vrot.slane %v140, 4
  %v142 = vadd.f32 %v140, %v141
  %v143 = vrot.slane %v142, 2
  %v144 = vadd.f32 %v142, %v143
  %v145 = vrot.slane %v144, 1
  %v146 = vadd.f32 %v144, %v145
  %v149 = vsel %vm110, %v146, %v139
  %151 = vst [vmem:[%s4] sm:$0x3] %v149
  %vm152 = vcmp.eq.s32.totalorder %v25, 1
  %vm153 = vcmp.eq.s32.totalorder %v26, 1
  %v154 = vsel %vm152, 1, 0
  %v155 = vsel %vm153, 1, 0
  %v156 = vcvt.s32.f32 %v154
  %v157 = vcvt.s32.f32 %v155
  %v158 = vmul.f32 %v44, %v73
  %v159 = vmul.f32 %v46, %v74
  %v160 = vsel %vm152, %v16, %v89
  %v161 = vsel %vm153, %v20, %v90
  %v162 = vmul.f32 %v156, %v158
  %v163 = vmul.f32 %v157, %v159
  %v164 = vsel %vm93, %v162, 0.0
  %v165 = vrot.slane %v164, 4
  %v166 = vadd.f32 %v164, %v165
  %v167 = vrot.slane %v166, 2
  %v168 = vadd.f32 %v166, %v167
  %v169 = vrot.slane %v168, 1
  %v170 = vadd.f32 %v168, %v169
  %v171 = vsel %vm93, %v163, 0.0
  %v172 = vrot.slane %v171, 4
  %v173 = vadd.f32 %v171, %v172
  %v174 = vrot.slane %v173, 2
  %v175 = vadd.f32 %v173, %v174
  %v176 = vrot.slane %v175, 1
  %v177 = vadd.f32 %v175, %v176
  %v180 = vsel %vm110, %v177, %v170
  %s182 = scalar_lea.vmem %s2, 2
  %183 = vst [vmem:[%s182] sm:$0x3] %v180
  %v184 = vsel %vm93, %v158, 0.0
  %v185 = vrot.slane %v184, 4
  %v186 = vadd.f32 %v184, %v185
  %v187 = vrot.slane %v186, 2
  %v188 = vadd.f32 %v186, %v187
  %v189 = vrot.slane %v188, 1
  %v190 = vadd.f32 %v188, %v189
  %v191 = vsel %vm93, %v159, 0.0
  %v192 = vrot.slane %v191, 4
  %v193 = vadd.f32 %v191, %v192
  %v194 = vrot.slane %v193, 2
  %v195 = vadd.f32 %v193, %v194
  %v196 = vrot.slane %v195, 1
  %v197 = vadd.f32 %v195, %v196
  %v200 = vsel %vm110, %v197, %v190
  %s202 = scalar_lea.vmem %s3, 2
  %203 = vst [vmem:[%s202] sm:$0x3] %v200
  %v204 = vsel %vm93, %v156, 0.0
  %v205 = vrot.slane %v204, 4
  %v206 = vadd.f32 %v204, %v205
  %v207 = vrot.slane %v206, 2
  %v208 = vadd.f32 %v206, %v207
  %v209 = vrot.slane %v208, 1
  %v210 = vadd.f32 %v208, %v209
  %v211 = vsel %vm93, %v157, 0.0
  %v212 = vrot.slane %v211, 4
  %v213 = vadd.f32 %v211, %v212
  %v214 = vrot.slane %v213, 2
  %v215 = vadd.f32 %v213, %v214
  %v216 = vrot.slane %v215, 1
  %v217 = vadd.f32 %v215, %v216
  %v220 = vsel %vm110, %v217, %v210
  %s222 = scalar_lea.vmem %s4, 2
  %223 = vst [vmem:[%s222] sm:$0x3] %v220
  %vm224 = vcmp.eq.s32.totalorder %v25, 2
  %vm225 = vcmp.eq.s32.totalorder %v26, 2
  %v226 = vsel %vm224, 1, 0
  %v227 = vsel %vm225, 1, 0
  %v228 = vcvt.s32.f32 %v226
  %v229 = vcvt.s32.f32 %v227
  %v230 = vmul.f32 %v50, %v73
  %v231 = vmul.f32 %v52, %v74
  %v232 = vsel %vm224, %v17, %v160
  %v233 = vsel %vm225, %v21, %v161
  %v234 = vmul.f32 %v228, %v230
  %v235 = vmul.f32 %v229, %v231
  %v236 = vsel %vm93, %v234, 0.0
  %v237 = vrot.slane %v236, 4
  %v238 = vadd.f32 %v236, %v237
  %v239 = vrot.slane %v238, 2
  %v240 = vadd.f32 %v238, %v239
  %v241 = vrot.slane %v240, 1
  %v242 = vadd.f32 %v240, %v241
  %v243 = vsel %vm93, %v235, 0.0
  %v244 = vrot.slane %v243, 4
  %v245 = vadd.f32 %v243, %v244
  %v246 = vrot.slane %v245, 2
  %v247 = vadd.f32 %v245, %v246
  %v248 = vrot.slane %v247, 1
  %v249 = vadd.f32 %v247, %v248
  %v252 = vsel %vm110, %v249, %v242
  %s254 = scalar_lea.vmem %s2, 4
  %255 = vst [vmem:[%s254] sm:$0x3] %v252
  %v256 = vsel %vm93, %v230, 0.0
  %v257 = vrot.slane %v256, 4
  %v258 = vadd.f32 %v256, %v257
  %v259 = vrot.slane %v258, 2
  %v260 = vadd.f32 %v258, %v259
  %v261 = vrot.slane %v260, 1
  %v262 = vadd.f32 %v260, %v261
  %v263 = vsel %vm93, %v231, 0.0
  %v264 = vrot.slane %v263, 4
  %v265 = vadd.f32 %v263, %v264
  %v266 = vrot.slane %v265, 2
  %v267 = vadd.f32 %v265, %v266
  %v268 = vrot.slane %v267, 1
  %v269 = vadd.f32 %v267, %v268
  %v272 = vsel %vm110, %v269, %v262
  %s274 = scalar_lea.vmem %s3, 4
  %275 = vst [vmem:[%s274] sm:$0x3] %v272
  %v276 = vsel %vm93, %v228, 0.0
  %v277 = vrot.slane %v276, 4
  %v278 = vadd.f32 %v276, %v277
  %v279 = vrot.slane %v278, 2
  %v280 = vadd.f32 %v278, %v279
  %v281 = vrot.slane %v280, 1
  %v282 = vadd.f32 %v280, %v281
  %v283 = vsel %vm93, %v229, 0.0
  %v284 = vrot.slane %v283, 4
  %v285 = vadd.f32 %v283, %v284
  %v286 = vrot.slane %v285, 2
  %v287 = vadd.f32 %v285, %v286
  %v288 = vrot.slane %v287, 1
  %v289 = vadd.f32 %v287, %v288
  %v292 = vsel %vm110, %v289, %v282
  %s294 = scalar_lea.vmem %s4, 4
  %295 = vst [vmem:[%s294] sm:$0x3] %v292
  %vm296 = vcmp.eq.s32.totalorder %v25, 3
  %vm297 = vcmp.eq.s32.totalorder %v26, 3
  %v298 = vsel %vm296, 1, 0
  %v299 = vsel %vm297, 1, 0
  %v300 = vcvt.s32.f32 %v298
  %v301 = vcvt.s32.f32 %v299
  %v302 = vmul.f32 %v56, %v73
  %v303 = vmul.f32 %v58, %v74
  %v304 = vsel %vm296, %v18, %v232
  %v305 = vsel %vm297, %v22, %v233
  %v306 = vmul.f32 %v300, %v302
  %v307 = vmul.f32 %v301, %v303
  %v308 = vsel %vm93, %v306, 0.0
  %v309 = vrot.slane %v308, 4
  %v310 = vadd.f32 %v308, %v309
  %v311 = vrot.slane %v310, 2
  %v312 = vadd.f32 %v310, %v311
  %v313 = vrot.slane %v312, 1
  %v314 = vadd.f32 %v312, %v313
  %v315 = vsel %vm93, %v307, 0.0
  %v316 = vrot.slane %v315, 4
  %v317 = vadd.f32 %v315, %v316
  %v318 = vrot.slane %v317, 2
  %v319 = vadd.f32 %v317, %v318
  %v320 = vrot.slane %v319, 1
  %v321 = vadd.f32 %v319, %v320
  %v324 = vsel %vm110, %v321, %v314
  %s326 = scalar_lea.vmem %s2, 6
  %327 = vst [vmem:[%s326] sm:$0x3] %v324
  %v328 = vsel %vm93, %v302, 0.0
  %v329 = vrot.slane %v328, 4
  %v330 = vadd.f32 %v328, %v329
  %v331 = vrot.slane %v330, 2
  %v332 = vadd.f32 %v330, %v331
  %v333 = vrot.slane %v332, 1
  %v334 = vadd.f32 %v332, %v333
  %v335 = vsel %vm93, %v303, 0.0
  %v336 = vrot.slane %v335, 4
  %v337 = vadd.f32 %v335, %v336
  %v338 = vrot.slane %v337, 2
  %v339 = vadd.f32 %v337, %v338
  %v340 = vrot.slane %v339, 1
  %v341 = vadd.f32 %v339, %v340
  %v344 = vsel %vm110, %v341, %v334
  %s346 = scalar_lea.vmem %s3, 6
  %347 = vst [vmem:[%s346] sm:$0x3] %v344
  %v348 = vsel %vm93, %v300, 0.0
  %v349 = vrot.slane %v348, 4
  %v350 = vadd.f32 %v348, %v349
  %v351 = vrot.slane %v350, 2
  %v352 = vadd.f32 %v350, %v351
  %v353 = vrot.slane %v352, 1
  %v354 = vadd.f32 %v352, %v353
  %v355 = vsel %vm93, %v301, 0.0
  %v356 = vrot.slane %v355, 4
  %v357 = vadd.f32 %v355, %v356
  %v358 = vrot.slane %v357, 2
  %v359 = vadd.f32 %v357, %v358
  %v360 = vrot.slane %v359, 1
  %v361 = vadd.f32 %v359, %v360
  %v364 = vsel %vm110, %v361, %v354
  %s366 = scalar_lea.vmem %s4, 6
  %367 = vst [vmem:[%s366] sm:$0x3] %v364
  %v368 = vsub.f32 %v79, %v304
  %v369 = vsub.f32 %v80, %v305
  %v370 = vsel %vm27, %v368, 0.0
  %v371 = vsel %vm28, %v369, 0.0
  %v372 = vsel %vm93, %v370, 0.0
  %v373 = vrot.slane %v372, 4
  %v374 = vadd.f32 %v372, %v373
  %v375 = vrot.slane %v374, 2
  %v376 = vadd.f32 %v374, %v375
  %v377 = vrot.slane %v376, 1
  %v378 = vadd.f32 %v376, %v377
  %v379 = vsel %vm93, %v371, 0.0
  %v380 = vrot.slane %v379, 4
  %v381 = vadd.f32 %v379, %v380
  %v382 = vrot.slane %v381, 2
  %v383 = vadd.f32 %v381, %v382
  %v384 = vrot.slane %v383, 1
  %v385 = vadd.f32 %v383, %v384
  %v388 = vsel %vm110, %v385, %v378
  %390 = vst [vmem:[%s5] sm:$0x3] %v388
  // Predicated region
  $region10: #{criterion.1} parent=0 // pred_check
    _
  $region11: #{criterion.1} parent=0 // pred_check_branch
    %392 = sbr.rel (0) target = $region13
  $region12: #{criterion.1} parent=0 // pred_region
    _
  $region13: #{criterion.1} parent=0 // pred_fallthru
    _
  // Predicated region
  $region14: #{criterion.1} parent=0 // pred_check
    _
  $region15: #{criterion.1} parent=0 // pred_check_branch
    %394 = sbr.rel (0) target = $region17
  $region16: #{criterion.1} parent=0 // pred_region
    _
  $region17: #{criterion.1} parent=0 // pred_fallthru
    _
  // Predicated region
  $region18: #{criterion.1} parent=0 // pred_check
    _
  $region19: #{criterion.1} parent=0 // pred_check_branch
    %396 = sbr.rel (0) target = $region21
  $region20: #{criterion.1} parent=0 // pred_region
    _
  $region21: #{criterion.1} parent=0 // pred_fallthru
    _
  // Predicated region
  $region22: #{criterion.1} parent=0 // pred_check
    _
  $region23: #{criterion.1} parent=0 // pred_check_branch
    %398 = sbr.rel (0) target = $region25
  $region24: #{criterion.1} parent=0 // pred_region
    _
  $region25: #{criterion.1} parent=0 // pred_fallthru
    _
  // Predicated region
  $region26: #{criterion.1} parent=0 // pred_check
    _
  $region27: #{criterion.1} parent=0 // pred_check_branch
    %400 = sbr.rel (0) target = $region29
  $region28: #{criterion.1} parent=0 // pred_region
    _
  $region29: #{criterion.1} parent=0 // pred_fallthru
    _
  // Predicated region
  $region30: #{criterion.1} parent=0 // pred_check
    _
  $region31: #{criterion.1} parent=0 // pred_check_branch
    %402 = sbr.rel (0) target = $region33
  $region32: #{criterion.1} parent=0 // pred_region
    _
  $region33: #{criterion.1} parent=0 // pred_fallthru
    _
  // Predicated region
  $region34: #{criterion.1} parent=0 // pred_check
    _
  $region35: #{criterion.1} parent=0 // pred_check_branch
    %404 = sbr.rel (0) target = $region37
  $region36: #{criterion.1} parent=0 // pred_region
    _
  $region37: #{criterion.1} parent=0 // pred_fallthru
    _
  // Predicated region
  $region38: #{criterion.1} parent=0 // pred_check
    _
  $region39: #{criterion.1} parent=0 // pred_check_branch
    %406 = sbr.rel (0) target = $region41
  $region40: #{criterion.1} parent=0 // pred_region
    _
  $region41: #{criterion.1} parent=0 // pred_fallthru
    _

</llo_original>
